<compile_context>
chip_gen: v7x
topology: tpu7x:2x2x1
jax: 0.10.0
libtpu: 0.0.40
codegen_flags: <defaults>
</compile_context>

<pallas_src>
import jax
import jax.numpy as jnp
from jax.experimental import pallas as pl
from jax.experimental.pallas import tpu as pltpu


def _round_up(x, m):
    return ((x + m - 1) // m) * m


def _pick_tile_v(v_pad, max_tile):
    """Largest multiple of 128 that divides v_pad and is <= max_tile."""
    t = min(v_pad, max(128, (max_tile // 128) * 128))
    while v_pad % t != 0:
        t -= 128
    return t


def _ans_trans_kernel(
    idx_ref,       # SMEM (B,) int32  : answer token ids (scalar prefetch)
    emb_ref,       # HBM  (V, Wp)     : embedding table (rows DMA-gathered)
    h_ref,         # VMEM (Bp, Hp)    : previous GRU hidden state
    wi_ref,        # VMEM (Wp, 3*Hp)  : folded transform + input gates [r|z|n]
    wh_ref,        # VMEM (Hp, 3*Hp)  : hidden gates [r|z|n]
    bi_ref,        # VMEM (1, 3*Hp)
    bh_ref,        # VMEM (1, 3*Hp)
    wo_ref,        # VMEM (Hp, TV)    : vocab-projection tile
    bo_ref,        # VMEM (1, TV)
    logits_ref,    # out  (Bp, TV)
    hnew_ref,      # out  (Bp, Hp)
    x_buf,         # scratch VMEM (Bp, Wp) : gathered embeddings
    h_acc,         # scratch VMEM (Bp, Hp) : new hidden state (grid-resident)
    sem,           # scratch DMA semaphores (B,)
):
    Hp = h_ref.shape[1]
    B = idx_ref.shape[0]

    # GRU step runs once (first vocab tile); h_new stays VMEM-resident after.
    @pl.when(pl.program_id(0) == 0)
    def _():
        # DMA-gather one embedding row per (real) batch element.  Padded batch
        # rows of x_buf stay uninitialized: all downstream math is row-wise
        # independent, so garbage cannot leak into the rows we keep.
        copies = [
            pltpu.make_async_copy(
                emb_ref.at[pl.ds(idx_ref[b], 1), :],
                x_buf.at[pl.ds(b, 1), :],
                sem.at[b],
            )
            for b in range(B)
        ]
        for cp in copies:
            cp.start()
        for cp in copies:
            cp.wait()

        x = x_buf[...]                      # (Bp, Wp)
        h = h_ref[...]                      # (Bp, Hp)

        # Fused gate matmuls: two MXU pushes instead of six (transform already
        # folded into wi/bi).  Gate order matches PyTorch: [r | z | n].
        gi = jnp.dot(x, wi_ref[...], preferred_element_type=jnp.float32) + bi_ref[...]
        gh = jnp.dot(h, wh_ref[...], preferred_element_type=jnp.float32) + bh_ref[...]

        r = jax.nn.sigmoid(gi[:, 0:Hp] + gh[:, 0:Hp])
        z = jax.nn.sigmoid(gi[:, Hp:2 * Hp] + gh[:, Hp:2 * Hp])
        n = jnp.tanh(gi[:, 2 * Hp:3 * Hp] + r * gh[:, 2 * Hp:3 * Hp])
        h_new = (1.0 - z) * n + z * h

        h_acc[...] = h_new
        hnew_ref[...] = h_new               # resident output block (constant idx)

    # Vocab projection for this tile (every grid step).
    logits_ref[...] = (
        jnp.dot(h_acc[...], wo_ref[...], preferred_element_type=jnp.float32)
        + bo_ref[...]
    )


def ans_navie_trans_forward(kparams, hidden, ans_idx, *, vocab_size, tile_v=512):
    """hidden: (1, B, H) f32; ans_idx: (B,) int32 -> (logits (B, V), hidden (1, B, H))."""
    B = ans_idx.shape[0]
    H = hidden.shape[2]

    Wp = kparams["w_i"].shape[0]
    Hp = kparams["w_h"].shape[0]
    Vp = kparams["w_o"].shape[1]
    Bp = _round_up(max(B, 1), 8)

    h0p = jnp.pad(hidden[0].astype(jnp.float32), ((0, Bp - B), (0, Hp - H)))

    tv = _pick_tile_v(Vp, tile_v)
    n_vt = Vp // tv

    grid_spec = pltpu.PrefetchScalarGridSpec(
        num_scalar_prefetch=1,
        grid=(n_vt,),
        in_specs=[
            pl.BlockSpec(memory_space=pl.ANY),                       # embedding (HBM)
            pl.BlockSpec((Bp, Hp), lambda j, idx: (0, 0)),           # h0
            pl.BlockSpec((Wp, 3 * Hp), lambda j, idx: (0, 0)),       # w_i (folded, fused)
            pl.BlockSpec((Hp, 3 * Hp), lambda j, idx: (0, 0)),       # w_h (fused)
            pl.BlockSpec((1, 3 * Hp), lambda j, idx: (0, 0)),        # b_i
            pl.BlockSpec((1, 3 * Hp), lambda j, idx: (0, 0)),        # b_h
            pl.BlockSpec((Hp, tv), lambda j, idx: (0, j)),           # w_o tile
            pl.BlockSpec((1, tv), lambda j, idx: (0, j)),            # b_o tile
        ],
        out_specs=(
            pl.BlockSpec((Bp, tv), lambda j, idx: (0, j)),           # logits tile
            pl.BlockSpec((Bp, Hp), lambda j, idx: (0, 0)),           # new hidden
        ),
        scratch_shapes=[
            pltpu.VMEM((Bp, Wp), jnp.float32),                       # gathered embeds
            pltpu.VMEM((Bp, Hp), jnp.float32),                       # h_new accumulator
            pltpu.SemaphoreType.DMA((B,)),
        ],
    )

    logits_p, hnew_p = pl.pallas_call(
        _ans_trans_kernel,
        grid_spec=grid_spec,
        out_shape=(
            jax.ShapeDtypeStruct((Bp, Vp), jnp.float32),
            jax.ShapeDtypeStruct((Bp, Hp), jnp.float32),
        ),
        # "arbitrary": h_new / GRU state is computed at j==0 and carried in
        # VMEM scratch across the vocab-tile axis.  For very large V on v7x,
        # also set vmem_limit_bytes with headroom under its 64 MiB VMEM.
        compiler_params=pltpu.CompilerParams(dimension_semantics=("arbitrary",)),
    )(
        ans_idx.astype(jnp.int32),
        kparams["embedding"], h0p,
        kparams["w_i"], kparams["w_h"], kparams["b_i"], kparams["b_h"],
        kparams["w_o"], kparams["b_o"],
    )

    return logits_p[:B, :vocab_size], hnew_p[None, :B, :H]


def init_params(key, vocab_size, dim_word, dim_hidden):
    """Torch-layout parameters (for the pure-JAX reference)."""
    ks = jax.random.split(key, 9)
    H = dim_hidden

    def xavier_normal(k, fan_out, fan_in):
        std = (2.0 / (fan_in + fan_out)) ** 0.5
        return std * jax.random.normal(k, (fan_out, fan_in), jnp.float32)

    def uniform(k, shape, bound):
        return jax.random.uniform(k, shape, jnp.float32, -bound, bound)

    # Embedding: synthetic stand-in for the GloVe matrix.
    embedding = 0.1 * jax.random.normal(ks[0], (vocab_size, dim_word), jnp.float32)

    # transform[0] = Linear(dim_word, dim_hidden), xavier_normal_ weight.
    w_t = xavier_normal(ks[1], H, dim_word)             # (out, in)
    b_t = uniform(ks[2], (H,), dim_word ** -0.5)

    # GRU weights, torch default uniform(-1/sqrt(H), 1/sqrt(H)), gate order r,z,n.
    k_gru = H ** -0.5
    w_ih = uniform(ks[3], (3 * H, H), k_gru)            # GRU input size = dim_hidden
    w_hh = uniform(ks[4], (3 * H, H), k_gru)
    b_ih = uniform(ks[5], (3 * H,), k_gru)
    b_hh = uniform(ks[6], (3 * H,), k_gru)

    # out = Linear(dim_hidden, vocab_size), xavier_normal_ weight.
    w_o = xavier_normal(ks[7], vocab_size, H)
    b_o = uniform(ks[8], (vocab_size,), H ** -0.5)

    return {
        "embedding": embedding,
        "w_t": w_t, "b_t": b_t,
        "w_ih": w_ih, "w_hh": w_hh, "b_ih": b_ih, "b_hh": b_hh,
        "w_o": w_o, "b_o": b_o,
    }


def prepare_kernel_params(p, *, lane=128):
    """Glue (done once at load time): fold the transform Linear into the GRU
    input gates, fuse per-gate weights into (., 3*Hp) slabs, transpose to
    (in, out) layout, and zero-pad to (8, 128)-aligned shapes."""
    V, W = p["embedding"].shape
    H = p["w_hh"].shape[1]
    Wp = _round_up(W, lane)
    Hp = _round_up(H, lane)
    Vp = _round_up(V, lane)

    wt = p["w_t"].T                       # (W, H)
    wih = p["w_ih"].T                     # (H, 3H)  columns [r|z|n]
    whh = p["w_hh"].T                     # (H, 3H)
    w_i = wt @ wih                        # (W, 3H)  folded transform + input gates
    b_i = p["b_t"] @ wih + p["b_ih"]      # (3H,)
    w_h = whh
    b_h = p["b_hh"]
    w_o = p["w_o"].T                      # (H, V)
    b_o = p["b_o"]

    def pad2(a, rows, cols):
        return jnp.pad(a, ((0, rows - a.shape[0]), (0, cols - a.shape[1])))

    def pad_gate_cols(a, rows_p):         # (rows, 3H) -> (rows_p, 3*Hp), gate-wise
        return jnp.concatenate(
            [pad2(a[:, g * H:(g + 1) * H], rows_p, Hp) for g in range(3)], axis=1)

    def pad_gate_row(v):                  # (3H,) -> (1, 3*Hp), gate-wise
        return jnp.concatenate(
            [jnp.pad(v[g * H:(g + 1) * H], (0, Hp - H)) for g in range(3)])[None, :]

    return {
        "embedding": pad2(p["embedding"], V, Wp),        # rows unpadded (gathered)
        "w_i": pad_gate_cols(w_i, Wp),
        "w_h": pad_gate_cols(w_h, Hp),
        "b_i": pad_gate_row(b_i),
        "b_h": pad_gate_row(b_h),
        "w_o": pad2(w_o, Hp, Vp),
        "b_o": jnp.pad(b_o, (0, Vp - V))[None, :],
    }


def _reference_forward(p, hidden, ans_idx):
    """Pure-JAX mirror of the PyTorch module (unfused, unfolded, unpadded)."""
    H = p["w_hh"].shape[1]
    x = jnp.take(p["embedding"], ans_idx, axis=0)
    e = x @ p["w_t"].T + p["b_t"]
    h = hidden[0]
    gi = e @ p["w_ih"].T + p["b_ih"]
    gh = h @ p["w_hh"].T + p["b_hh"]
    r = jax.nn.sigmoid(gi[:, :H] + gh[:, :H])
    z = jax.nn.sigmoid(gi[:, H:2 * H] + gh[:, H:2 * H])
    n = jnp.tanh(gi[:, 2 * H:] + r * gh[:, 2 * H:])
    h_new = (1.0 - z) * n + z * h
    logits = h_new @ p["w_o"].T + p["b_o"]
    return logits, h_new[None]


if __name__ == "__main__":
    vocab_size = 128
    max_len = 8            # unused by forward()
    dim_word = 32
    dim_hidden = 32
    batch = 4

    key = jax.random.PRNGKey(0)
    k_param, k_hidden, k_idx = jax.random.split(key, 3)

    torch_params = init_params(k_param, vocab_size, dim_word, dim_hidden)
    kernel_params = prepare_kernel_params(torch_params)

    hidden = jax.random.normal(k_hidden, (1, batch, dim_hidden), jnp.float32)
    ans_idx = jax.random.randint(k_idx, (batch,), 0, vocab_size, dtype=jnp.int32)

    fwd = jax.jit(ans_navie_trans_forward, static_argnames=("vocab_size", "tile_v"))
    logits, new_hidden = fwd(kernel_params, hidden, ans_idx, vocab_size=vocab_size)
    logits = jax.block_until_ready(logits)
    new_hidden = jax.block_until_ready(new_hidden)

    ref_logits, ref_hidden = _reference_forward(torch_params, hidden, ans_idx)
    assert logits.shape == (batch, vocab_size)
    assert new_hidden.shape == (1, batch, dim_hidden)
    assert jnp.allclose(logits, ref_logits, atol=1e-4, rtol=1e-4), \
        float(jnp.max(jnp.abs(logits - ref_logits)))
    assert jnp.allclose(new_hidden, ref_hidden, atol=1e-4, rtol=1e-4), \
        float(jnp.max(jnp.abs(new_hidden - ref_hidden)))

    print("KERNEL_OK")
</pallas_src>

<mosaic_0001>
module attributes {stable_mosaic.version = 11 : i64} {
  func.func @_ans_trans_kernel(%arg0: i32, %arg1: memref<4xi32, #tpu.memory_space<smem>>, %arg2: memref<128x128xf32, #tpu.memory_space<any>>, %arg3: memref<8x128xf32, #tpu.memory_space<vmem>>, %arg4: memref<128x384xf32, #tpu.memory_space<vmem>>, %arg5: memref<128x384xf32, #tpu.memory_space<vmem>>, %arg6: memref<1x384xf32, #tpu.memory_space<vmem>>, %arg7: memref<1x384xf32, #tpu.memory_space<vmem>>, %arg8: memref<128x128xf32, #tpu.memory_space<vmem>>, %arg9: memref<1x128xf32, #tpu.memory_space<vmem>>, %arg10: memref<8x128xf32, #tpu.memory_space<vmem>>, %arg11: memref<8x128xf32, #tpu.memory_space<vmem>>, %arg12: memref<8x128xf32, #tpu.memory_space<vmem>>, %arg13: memref<8x128xf32, #tpu.memory_space<vmem>>, %arg14: memref<4x!tpu.dma_semaphore, #tpu.memory_space<semaphore_mem>>) attributes {dimension_semantics = [#tpu.dimension_semantics<arbitrary>], iteration_bounds = array<i64: 1>, scalar_prefetch = 1 : i64, scratch_operands = 3 : i64, tpu.core_type = #tpu.core_type<tc>, window_params = [{}, {pipeline_mode = #tpu.pipeline_mode<synchronous>, transform_indices = @transform_1, window_bounds = array<i64: 8, 128>}, {pipeline_mode = #tpu.pipeline_mode<synchronous>, transform_indices = @transform_2, window_bounds = array<i64: 128, 384>}, {pipeline_mode = #tpu.pipeline_mode<synchronous>, transform_indices = @transform_3, window_bounds = array<i64: 128, 384>}, {pipeline_mode = #tpu.pipeline_mode<synchronous>, transform_indices = @transform_4, window_bounds = array<i64: 1, 384>}, {pipeline_mode = #tpu.pipeline_mode<synchronous>, transform_indices = @transform_5, window_bounds = array<i64: 1, 384>}, {transform_indices = @transform_6, window_bounds = array<i64: 128, 128>}, {transform_indices = @transform_7, window_bounds = array<i64: 1, 128>}, {transform_indices = @transform_8, window_bounds = array<i64: 8, 128>}, {pipeline_mode = #tpu.pipeline_mode<synchronous>, transform_indices = @transform_9, window_bounds = array<i64: 8, 128>}]} {
    %c0_i32 = arith.constant 0 : i32
    %0 = arith.cmpi eq, %arg0, %c0_i32 : i32
    %1 = arith.extui %0 : i1 to i32
    %c0_i32_0 = arith.constant 0 : i32
    %2 = arith.cmpi ne, %1, %c0_i32_0 : i32
    scf.if %2 {
      %c0_8 = arith.constant 0 : index
      %10 = memref.load %arg1[%c0_8] : memref<4xi32, #tpu.memory_space<smem>>
      %c1 = arith.constant 1 : index
      %11 = memref.load %arg1[%c1] : memref<4xi32, #tpu.memory_space<smem>>
      %c2 = arith.constant 2 : index
      %12 = memref.load %arg1[%c2] : memref<4xi32, #tpu.memory_space<smem>>
      %c3 = arith.constant 3 : index
      %13 = memref.load %arg1[%c3] : memref<4xi32, #tpu.memory_space<smem>>
      %c0_i32_9 = arith.constant 0 : i32
      %c0_i32_10 = arith.constant 0 : i32
      %14 = tpu.memref_slice %arg2[%10, %c0_i32_10] : memref<128x128xf32, #tpu.memory_space<any>> -> memref<1x128xf32, #tpu.memory_space<any>>
      %c0_i32_11 = arith.constant 0 : i32
      %c0_i32_12 = arith.constant 0 : i32
      %15 = tpu.memref_slice %arg12[%c0_i32_11, %c0_i32_12] : memref<8x128xf32, #tpu.memory_space<vmem>> -> memref<1x128xf32, #tpu.memory_space<vmem>>
      %16 = tpu.memref_slice %arg14[%c0_i32_9] : memref<4x!tpu.dma_semaphore, #tpu.memory_space<semaphore_mem>> -> memref<1x!tpu.dma_semaphore, #tpu.memory_space<semaphore_mem>>
      %17 = tpu.memref_squeeze %16 : memref<1x!tpu.dma_semaphore, #tpu.memory_space<semaphore_mem>> -> memref<!tpu.dma_semaphore, #tpu.memory_space<semaphore_mem>>
      tpu.enqueue_dma source(%14 : memref<1x128xf32, #tpu.memory_space<any>>) target(%15 : memref<1x128xf32, #tpu.memory_space<vmem>>) target_semaphore(%17 : memref<!tpu.dma_semaphore, #tpu.memory_space<semaphore_mem>>)
      %c1_i32 = arith.constant 1 : i32
      %c0_i32_13 = arith.constant 0 : i32
      %18 = tpu.memref_slice %arg2[%11, %c0_i32_13] : memref<128x128xf32, #tpu.memory_space<any>> -> memref<1x128xf32, #tpu.memory_space<any>>
      %c1_i32_14 = arith.constant 1 : i32
      %c0_i32_15 = arith.constant 0 : i32
      %19 = tpu.memref_slice %arg12[%c1_i32_14, %c0_i32_15] : memref<8x128xf32, #tpu.memory_space<vmem>> -> memref<1x128xf32, #tpu.memory_space<vmem>>
      %20 = tpu.memref_slice %arg14[%c1_i32] : memref<4x!tpu.dma_semaphore, #tpu.memory_space<semaphore_mem>> -> memref<1x!tpu.dma_semaphore, #tpu.memory_space<semaphore_mem>>
      %21 = tpu.memref_squeeze %20 : memref<1x!tpu.dma_semaphore, #tpu.memory_space<semaphore_mem>> -> memref<!tpu.dma_semaphore, #tpu.memory_space<semaphore_mem>>
      tpu.enqueue_dma source(%18 : memref<1x128xf32, #tpu.memory_space<any>>) target(%19 : memref<1x128xf32, #tpu.memory_space<vmem>>) target_semaphore(%21 : memref<!tpu.dma_semaphore, #tpu.memory_space<semaphore_mem>>)
      %c2_i32 = arith.constant 2 : i32
      %c0_i32_16 = arith.constant 0 : i32
      %22 = tpu.memref_slice %arg2[%12, %c0_i32_16] : memref<128x128xf32, #tpu.memory_space<any>> -> memref<1x128xf32, #tpu.memory_space<any>>
      %c2_i32_17 = arith.constant 2 : i32
      %c0_i32_18 = arith.constant 0 : i32
      %23 = tpu.memref_slice %arg12[%c2_i32_17, %c0_i32_18] : memref<8x128xf32, #tpu.memory_space<vmem>> -> memref<1x128xf32, #tpu.memory_space<vmem>>
      %24 = tpu.memref_slice %arg14[%c2_i32] : memref<4x!tpu.dma_semaphore, #tpu.memory_space<semaphore_mem>> -> memref<1x!tpu.dma_semaphore, #tpu.memory_space<semaphore_mem>>
      %25 = tpu.memref_squeeze %24 : memref<1x!tpu.dma_semaphore, #tpu.memory_space<semaphore_mem>> -> memref<!tpu.dma_semaphore, #tpu.memory_space<semaphore_mem>>
      tpu.enqueue_dma source(%22 : memref<1x128xf32, #tpu.memory_space<any>>) target(%23 : memref<1x128xf32, #tpu.memory_space<vmem>>) target_semaphore(%25 : memref<!tpu.dma_semaphore, #tpu.memory_space<semaphore_mem>>)
      %c3_i32 = arith.constant 3 : i32
      %c0_i32_19 = arith.constant 0 : i32
      %26 = tpu.memref_slice %arg2[%13, %c0_i32_19] : memref<128x128xf32, #tpu.memory_space<any>> -> memref<1x128xf32, #tpu.memory_space<any>>
      %c3_i32_20 = arith.constant 3 : i32
      %c0_i32_21 = arith.constant 0 : i32
      %27 = tpu.memref_slice %arg12[%c3_i32_20, %c0_i32_21] : memref<8x128xf32, #tpu.memory_space<vmem>> -> memref<1x128xf32, #tpu.memory_space<vmem>>
      %28 = tpu.memref_slice %arg14[%c3_i32] : memref<4x!tpu.dma_semaphore, #tpu.memory_space<semaphore_mem>> -> memref<1x!tpu.dma_semaphore, #tpu.memory_space<semaphore_mem>>
      %29 = tpu.memref_squeeze %28 : memref<1x!tpu.dma_semaphore, #tpu.memory_space<semaphore_mem>> -> memref<!tpu.dma_semaphore, #tpu.memory_space<semaphore_mem>>
      tpu.enqueue_dma source(%26 : memref<1x128xf32, #tpu.memory_space<any>>) target(%27 : memref<1x128xf32, #tpu.memory_space<vmem>>) target_semaphore(%29 : memref<!tpu.dma_semaphore, #tpu.memory_space<semaphore_mem>>)
      %c0_i32_22 = arith.constant 0 : i32
      %c0_i32_23 = arith.constant 0 : i32
      %30 = tpu.memref_slice %arg2[%10, %c0_i32_23] : memref<128x128xf32, #tpu.memory_space<any>> -> memref<1x128xf32, #tpu.memory_space<any>>
      %c0_i32_24 = arith.constant 0 : i32
      %c0_i32_25 = arith.constant 0 : i32
      %31 = tpu.memref_slice %arg12[%c0_i32_24, %c0_i32_25] : memref<8x128xf32, #tpu.memory_space<vmem>> -> memref<1x128xf32, #tpu.memory_space<vmem>>
      %32 = tpu.memref_slice %arg14[%c0_i32_22] : memref<4x!tpu.dma_semaphore, #tpu.memory_space<semaphore_mem>> -> memref<1x!tpu.dma_semaphore, #tpu.memory_space<semaphore_mem>>
      %33 = tpu.memref_squeeze %32 : memref<1x!tpu.dma_semaphore, #tpu.memory_space<semaphore_mem>> -> memref<!tpu.dma_semaphore, #tpu.memory_space<semaphore_mem>>
      tpu.wait_dma2 semaphore(%33 : memref<!tpu.dma_semaphore, #tpu.memory_space<semaphore_mem>>) src(%30 : memref<1x128xf32, #tpu.memory_space<any>>) dst(%31 : memref<1x128xf32, #tpu.memory_space<vmem>>)
      %c1_i32_26 = arith.constant 1 : i32
      %c0_i32_27 = arith.constant 0 : i32
      %34 = tpu.memref_slice %arg2[%11, %c0_i32_27] : memref<128x128xf32, #tpu.memory_space<any>> -> memref<1x128xf32, #tpu.memory_space<any>>
      %c1_i32_28 = arith.constant 1 : i32
      %c0_i32_29 = arith.constant 0 : i32
      %35 = tpu.memref_slice %arg12[%c1_i32_28, %c0_i32_29] : memref<8x128xf32, #tpu.memory_space<vmem>> -> memref<1x128xf32, #tpu.memory_space<vmem>>
      %36 = tpu.memref_slice %arg14[%c1_i32_26] : memref<4x!tpu.dma_semaphore, #tpu.memory_space<semaphore_mem>> -> memref<1x!tpu.dma_semaphore, #tpu.memory_space<semaphore_mem>>
      %37 = tpu.memref_squeeze %36 : memref<1x!tpu.dma_semaphore, #tpu.memory_space<semaphore_mem>> -> memref<!tpu.dma_semaphore, #tpu.memory_space<semaphore_mem>>
      tpu.wait_dma2 semaphore(%37 : memref<!tpu.dma_semaphore, #tpu.memory_space<semaphore_mem>>) src(%34 : memref<1x128xf32, #tpu.memory_space<any>>) dst(%35 : memref<1x128xf32, #tpu.memory_space<vmem>>)
      %c2_i32_30 = arith.constant 2 : i32
      %c0_i32_31 = arith.constant 0 : i32
      %38 = tpu.memref_slice %arg2[%12, %c0_i32_31] : memref<128x128xf32, #tpu.memory_space<any>> -> memref<1x128xf32, #tpu.memory_space<any>>
      %c2_i32_32 = arith.constant 2 : i32
      %c0_i32_33 = arith.constant 0 : i32
      %39 = tpu.memref_slice %arg12[%c2_i32_32, %c0_i32_33] : memref<8x128xf32, #tpu.memory_space<vmem>> -> memref<1x128xf32, #tpu.memory_space<vmem>>
      %40 = tpu.memref_slice %arg14[%c2_i32_30] : memref<4x!tpu.dma_semaphore, #tpu.memory_space<semaphore_mem>> -> memref<1x!tpu.dma_semaphore, #tpu.memory_space<semaphore_mem>>
      %41 = tpu.memref_squeeze %40 : memref<1x!tpu.dma_semaphore, #tpu.memory_space<semaphore_mem>> -> memref<!tpu.dma_semaphore, #tpu.memory_space<semaphore_mem>>
      tpu.wait_dma2 semaphore(%41 : memref<!tpu.dma_semaphore, #tpu.memory_space<semaphore_mem>>) src(%38 : memref<1x128xf32, #tpu.memory_space<any>>) dst(%39 : memref<1x128xf32, #tpu.memory_space<vmem>>)
      %c3_i32_34 = arith.constant 3 : i32
      %c0_i32_35 = arith.constant 0 : i32
      %42 = tpu.memref_slice %arg2[%13, %c0_i32_35] : memref<128x128xf32, #tpu.memory_space<any>> -> memref<1x128xf32, #tpu.memory_space<any>>
      %c3_i32_36 = arith.constant 3 : i32
      %c0_i32_37 = arith.constant 0 : i32
      %43 = tpu.memref_slice %arg12[%c3_i32_36, %c0_i32_37] : memref<8x128xf32, #tpu.memory_space<vmem>> -> memref<1x128xf32, #tpu.memory_space<vmem>>
      %44 = tpu.memref_slice %arg14[%c3_i32_34] : memref<4x!tpu.dma_semaphore, #tpu.memory_space<semaphore_mem>> -> memref<1x!tpu.dma_semaphore, #tpu.memory_space<semaphore_mem>>
      %45 = tpu.memref_squeeze %44 : memref<1x!tpu.dma_semaphore, #tpu.memory_space<semaphore_mem>> -> memref<!tpu.dma_semaphore, #tpu.memory_space<semaphore_mem>>
      tpu.wait_dma2 semaphore(%45 : memref<!tpu.dma_semaphore, #tpu.memory_space<semaphore_mem>>) src(%42 : memref<1x128xf32, #tpu.memory_space<any>>) dst(%43 : memref<1x128xf32, #tpu.memory_space<vmem>>)
      %c0_38 = arith.constant 0 : index
      %c0_39 = arith.constant 0 : index
      %46 = vector.load %arg12[%c0_38, %c0_39] : memref<8x128xf32, #tpu.memory_space<vmem>>, vector<8x128xf32>
      %c0_40 = arith.constant 0 : index
      %c0_41 = arith.constant 0 : index
      %47 = vector.load %arg3[%c0_40, %c0_41] : memref<8x128xf32, #tpu.memory_space<vmem>>, vector<8x128xf32>
      %c0_42 = arith.constant 0 : index
      %c0_43 = arith.constant 0 : index
      %48 = vector.load %arg4[%c0_42, %c0_43] : memref<128x384xf32, #tpu.memory_space<vmem>>, vector<128x384xf32>
      %cst_44 = arith.constant dense<0.000000e+00> : vector<8x384xf32>
      %49 = tpu.matmul %46, %48, %cst_44 {dimension_numbers = #tpu.dot_dimension_numbers<[1], [0], [0], [1], [0, 0, 1, 1], [], []>} : vector<8x128xf32>, vector<128x384xf32>, vector<8x384xf32> -> vector<8x384xf32>
      %c0_45 = arith.constant 0 : index
      %c0_46 = arith.constant 0 : index
      %50 = vector.load %arg6[%c0_45, %c0_46] : memref<1x384xf32, #tpu.memory_space<vmem>>, vector<1x384xf32>
      %51 = vector.broadcast %50 : vector<1x384xf32> to vector<8x384xf32>
      %52 = arith.addf %49, %51 : vector<8x384xf32>
      %c0_47 = arith.constant 0 : index
      %c0_48 = arith.constant 0 : index
      %53 = vector.load %arg5[%c0_47, %c0_48] : memref<128x384xf32, #tpu.memory_space<vmem>>, vector<128x384xf32>
      %cst_49 = arith.constant dense<0.000000e+00> : vector<8x384xf32>
      %54 = tpu.matmul %47, %53, %cst_49 {dimension_numbers = #tpu.dot_dimension_numbers<[1], [0], [0], [1], [0, 0, 1, 1], [], []>} : vector<8x128xf32>, vector<128x384xf32>, vector<8x384xf32> -> vector<8x384xf32>
      %c0_50 = arith.constant 0 : index
      %c0_51 = arith.constant 0 : index
      %55 = vector.load %arg7[%c0_50, %c0_51] : memref<1x384xf32, #tpu.memory_space<vmem>>, vector<1x384xf32>
      %56 = vector.broadcast %55 : vector<1x384xf32> to vector<8x384xf32>
      %57 = arith.addf %54, %56 : vector<8x384xf32>
      %58 = vector.extract_strided_slice %52 {offsets = [0, 0], sizes = [8, 128], strides = [1, 1]} : vector<8x384xf32> to vector<8x128xf32>
      %59 = vector.extract_strided_slice %57 {offsets = [0, 0], sizes = [8, 128], strides = [1, 1]} : vector<8x384xf32> to vector<8x128xf32>
      %60 = arith.addf %58, %59 : vector<8x128xf32>
      %61 = arith.negf %60 : vector<8x128xf32>
      %62 = math.exp %61 : vector<8x128xf32>
      %cst_52 = arith.constant 1.000000e+00 : f32
      %63 = vector.broadcast %cst_52 : f32 to vector<8x128xf32>
      %64 = arith.addf %63, %62 : vector<8x128xf32>
      %65 = arith.divf %63, %64 : vector<8x128xf32>
      %66 = vector.extract_strided_slice %52 {offsets = [0, 128], sizes = [8, 128], strides = [1, 1]} : vector<8x384xf32> to vector<8x128xf32>
      %67 = vector.extract_strided_slice %57 {offsets = [0, 128], sizes = [8, 128], strides = [1, 1]} : vector<8x384xf32> to vector<8x128xf32>
      %68 = arith.addf %66, %67 : vector<8x128xf32>
      %69 = arith.negf %68 : vector<8x128xf32>
      %70 = math.exp %69 : vector<8x128xf32>
      %cst_53 = arith.constant 1.000000e+00 : f32
      %71 = vector.broadcast %cst_53 : f32 to vector<8x128xf32>
      %72 = arith.addf %71, %70 : vector<8x128xf32>
      %73 = arith.divf %71, %72 : vector<8x128xf32>
      %74 = vector.extract_strided_slice %52 {offsets = [0, 256], sizes = [8, 128], strides = [1, 1]} : vector<8x384xf32> to vector<8x128xf32>
      %75 = vector.extract_strided_slice %57 {offsets = [0, 256], sizes = [8, 128], strides = [1, 1]} : vector<8x384xf32> to vector<8x128xf32>
      %76 = arith.mulf %65, %75 : vector<8x128xf32>
      %77 = arith.addf %74, %76 : vector<8x128xf32>
      %78 = math.tanh %77 : vector<8x128xf32>
      %cst_54 = arith.constant 1.000000e+00 : f32
      %79 = vector.broadcast %cst_54 : f32 to vector<8x128xf32>
      %80 = arith.subf %79, %73 : vector<8x128xf32>
      %81 = arith.mulf %80, %78 : vector<8x128xf32>
      %82 = arith.mulf %73, %47 : vector<8x128xf32>
      %83 = arith.addf %81, %82 : vector<8x128xf32>
      %c0_55 = arith.constant 0 : index
      %c0_56 = arith.constant 0 : index
      %84 = vector.load %arg13[%c0_55, %c0_56] : memref<8x128xf32, #tpu.memory_space<vmem>>, vector<8x128xf32>
      tpu.vector_store %arg13[%c0_55, %c0_56], %83 {strides = array<i32>} : memref<8x128xf32, #tpu.memory_space<vmem>>, vector<8x128xf32>,
      %c0_57 = arith.constant 0 : index
      %c0_58 = arith.constant 0 : index
      %85 = vector.load %arg11[%c0_57, %c0_58] : memref<8x128xf32, #tpu.memory_space<vmem>>, vector<8x128xf32>
      tpu.vector_store %arg11[%c0_57, %c0_58], %83 {strides = array<i32>} : memref<8x128xf32, #tpu.memory_space<vmem>>, vector<8x128xf32>,
    } else {
    }
    %c0 = arith.constant 0 : index
    %c0_1 = arith.constant 0 : index
    %3 = vector.load %arg13[%c0, %c0_1] : memref<8x128xf32, #tpu.memory_space<vmem>>, vector<8x128xf32>
    %c0_2 = arith.constant 0 : index
    %c0_3 = arith.constant 0 : index
    %4 = vector.load %arg8[%c0_2, %c0_3] : memref<128x128xf32, #tpu.memory_space<vmem>>, vector<128x128xf32>
    %cst = arith.constant dense<0.000000e+00> : vector<8x128xf32>
    %5 = tpu.matmul %3, %4, %cst {dimension_numbers = #tpu.dot_dimension_numbers<[1], [0], [0], [1], [0, 0, 1, 1], [], []>} : vector<8x128xf32>, vector<128x128xf32>, vector<8x128xf32> -> vector<8x128xf32>
    %c0_4 = arith.constant 0 : index
    %c0_5 = arith.constant 0 : index
    %6 = vector.load %arg9[%c0_4, %c0_5] : memref<1x128xf32, #tpu.memory_space<vmem>>, vector<1x128xf32>
    %7 = vector.broadcast %6 : vector<1x128xf32> to vector<8x128xf32>
    %8 = arith.addf %5, %7 : vector<8x128xf32>
    %c0_6 = arith.constant 0 : index
    %c0_7 = arith.constant 0 : index
    %9 = vector.load %arg10[%c0_6, %c0_7] : memref<8x128xf32, #tpu.memory_space<vmem>>, vector<8x128xf32>
    tpu.vector_store %arg10[%c0_6, %c0_7], %8 {strides = array<i32>} : memref<8x128xf32, #tpu.memory_space<vmem>>, vector<8x128xf32>,
    return
  }
  func.func @transform_1(%arg0: i32, %arg1: memref<4xi32, #tpu.memory_space<smem>>) -> (i32, i32) {
    %c0_i32 = arith.constant 0 : i32
    %c0_i32_0 = arith.constant 0 : i32
    %c0_i32_1 = arith.constant 0 : i32
    return %c0_i32, %c0_i32_0 : i32, i32
  }
  func.func @transform_2(%arg0: i32, %arg1: memref<4xi32, #tpu.memory_space<smem>>) -> (i32, i32) {
    %c0_i32 = arith.constant 0 : i32
    %c0_i32_0 = arith.constant 0 : i32
    %c0_i32_1 = arith.constant 0 : i32
    return %c0_i32, %c0_i32_0 : i32, i32
  }
  func.func @transform_3(%arg0: i32, %arg1: memref<4xi32, #tpu.memory_space<smem>>) -> (i32, i32) {
    %c0_i32 = arith.constant 0 : i32
    %c0_i32_0 = arith.constant 0 : i32
    %c0_i32_1 = arith.constant 0 : i32
    return %c0_i32, %c0_i32_0 : i32, i32
  }
  func.func @transform_4(%arg0: i32, %arg1: memref<4xi32, #tpu.memory_space<smem>>) -> (i32, i32) {
    %c0_i32 = arith.constant 0 : i32
    %c0_i32_0 = arith.constant 0 : i32
    %c0_i32_1 = arith.constant 0 : i32
    return %c0_i32, %c0_i32_0 : i32, i32
  }
  func.func @transform_5(%arg0: i32, %arg1: memref<4xi32, #tpu.memory_space<smem>>) -> (i32, i32) {
    %c0_i32 = arith.constant 0 : i32
    %c0_i32_0 = arith.constant 0 : i32
    %c0_i32_1 = arith.constant 0 : i32
    return %c0_i32, %c0_i32_0 : i32, i32
  }
  func.func @transform_6(%arg0: i32, %arg1: memref<4xi32, #tpu.memory_space<smem>>) -> (i32, i32) {
    %c0_i32 = arith.constant 0 : i32
    %c0_i32_0 = arith.constant 0 : i32
    return %c0_i32, %arg0 : i32, i32
  }
  func.func @transform_7(%arg0: i32, %arg1: memref<4xi32, #tpu.memory_space<smem>>) -> (i32, i32) {
    %c0_i32 = arith.constant 0 : i32
    %c0_i32_0 = arith.constant 0 : i32
    return %c0_i32, %arg0 : i32, i32
  }
  func.func @transform_8(%arg0: i32, %arg1: memref<4xi32, #tpu.memory_space<smem>>) -> (i32, i32) {
    %c0_i32 = arith.constant 0 : i32
    %c0_i32_0 = arith.constant 0 : i32
    return %c0_i32, %arg0 : i32, i32
  }
  func.func @transform_9(%arg0: i32, %arg1: memref<4xi32, #tpu.memory_space<smem>>) -> (i32, i32) {
    %c0_i32 = arith.constant 0 : i32
    %c0_i32_0 = arith.constant 0 : i32
    %c0_i32_1 = arith.constant 0 : i32
    return %c0_i32, %c0_i32_0 : i32, i32
  }
}

</mosaic_0001>

<llo_original>
// kernel: ans_navie_trans_forward.1
$region0: #{ans_navie_trans_forward.1}
  #allocation0 [shape = 'u32[]', space=smem, size = 0x4, offset = 0x4, fixed_abs, tag = 'smem constant byte address 0x4 - core index']
  #allocation1 [shape = 'u32[144,128]{1,0:T(1,128)}', space=vmem, size = 0x12000, scoped, tag = 'internal scratch']
  #allocation2 [shape = 'f32[8,128]{1,0:T(8,128)}', space=vmem, size = 0x1000, scoped, tag = 'scratch operand']
  #allocation3 [shape = 'f32[8,128]{1,0:T(8,128)}', space=vmem, size = 0x1000, scoped, tag = 'scratch operand']
  #allocation4 [shape = 's32[4]{0}', space=sflag, size = 0x10, scoped, tag = 'scratch operand']
  #allocation5 [shape = 's32[1]{0}', space=sflag, size = 0x4, scoped, tag = 'scoped memory for ans_navie_trans_forward.1']
  #allocation6 [shape = 'u8[512]{0}', space=smem, size = 0x200, scoped, tag = 'prefetched SMEM operand 0']
  #allocation12 [shape = 's32[]', space=sflag, size = 0x4, offset = 0, fixed_abs, tag = 'sflag constant byte address 0x0 - dummy sync flag']
  #allocation13 [shape = 's32[]', space=sflag, size = 0x4, offset = 0, fixed_abs, tag = 'sflag constant byte address 0x0 - dummy sync flag']
  #allocation14 [shape = 'u32[]', space=smem, size = 0x4, offset = 0x44, fixed_abs, tag = 'smem constant byte address 0x44 - assertion arg 0']
  #allocation15 [shape = 'u32[]', space=smem, size = 0x4, offset = 0x48, fixed_abs, tag = 'smem constant byte address 0x48 - assertion arg 1']
  #allocation16 [shape = 's32[]', space=sflag, size = 0x4, offset = 0, fixed_abs, tag = 'sflag constant byte address 0x0 - dummy sync flag']
  #allocation17 [shape = 's32[]', space=sflag, size = 0x4, offset = 0, fixed_abs, tag = 'sflag constant byte address 0x0 - dummy sync flag']
  #allocation18 [shape = 's32[]', space=sflag, size = 0x4, offset = 0, fixed_abs, tag = 'sflag constant byte address 0x0 - dummy sync flag']
  #allocation19 [shape = 's32[]', space=sflag, size = 0x4, offset = 0, fixed_abs, tag = 'sflag constant byte address 0x0 - dummy sync flag']
  #allocation20 [shape = 's32[]', space=sflag, size = 0x4, offset = 0, fixed_abs, tag = 'sflag constant byte address 0x0 - dummy sync flag']
  #allocation21 [shape = 's32[]', space=sflag, size = 0x4, offset = 0, fixed_abs, tag = 'sflag constant byte address 0x0 - dummy sync flag']
  %s0 = inlined_call_operand.vmem [shape: s32[4], index: 0, kind: input, shape index: {}]
  %s1 = inlined_call_operand.hbm [shape: f32[128,128], index: 1, kind: input, shape index: {}]
  %s2 = inlined_call_operand.vmem [shape: f32[8,128], index: 2, kind: input, shape index: {}]
  %s3 = inlined_call_operand.hbm [shape: f32[128,384], index: 3, kind: input, shape index: {}]
  %s4 = inlined_call_operand.hbm [shape: f32[128,384], index: 4, kind: input, shape index: {}]
  %s5 = inlined_call_operand.vmem [shape: f32[1,384], index: 5, kind: input, shape index: {}]
  %s6 = inlined_call_operand.vmem [shape: f32[1,384], index: 6, kind: input, shape index: {}]
  %s7 = inlined_call_operand.hbm [shape: f32[128,128], index: 7, kind: input, shape index: {}]
  %s8 = inlined_call_operand.vmem [shape: f32[1,128], index: 8, kind: input, shape index: {}]
  %s9 = inlined_call_operand.vmem [shape: f32[8,128], index: 9, kind: output, shape index: {0}]
  %s10 = inlined_call_operand.vmem [shape: f32[8,128], index: 10, kind: output, shape index: {1}]
  %11 = xla_tuple %s9, %s10
  %s12 = sld [smem:[#allocation0]]
  $region78: #{ans_navie_trans_forward.1} parent=0
    _
  %s14 = ssub.s32 1, %s12
  %s15 = scalar_select 0, %s14, %s12
  %s16 = sshll.u32 %s0, 4
  %s17 = int_to_ptr.vmem [resolvable:$true] %s16
  %19 = dma.vmem_to_smem %s17, 16, [#allocation6], [#allocation5]
  %20 = dma.done [#allocation5], 16
  %21 = sfence
  $region1: #{ans_navie_trans_forward.1} parent=0
    #allocation7 [shape = 'u8[196608]{0}', space=vmem, size = 0x30000, scoped, tag = 'input window, operand 3, single buffered']
    #allocation8 [shape = 's32[1]{0}', space=sflag, size = 0x4, scoped, tag = 'scoped memory for ans_navie_trans_forward.1']
    #allocation9 [shape = 'u8[196608]{0}', space=vmem, size = 0x30000, scoped, tag = 'input window, operand 4, single buffered']
    #allocation10 [shape = 's32[1]{0}', space=sflag, size = 0x4, scoped, tag = 'scoped memory for ans_navie_trans_forward.1']
    #allocation11 [shape = 'u8[65536]{0}', space=vmem, size = 0x10000, scoped, tag = 'input window, operand 7, single buffered']
    %22 = vsyncpa [#allocation8], 0
    %23 = vsyncpa [#allocation10], 0
    // Predicated region
    $region2: #{ans_navie_trans_forward.1} parent=1 // pred_check
      _
    $region3: #{ans_navie_trans_forward.1} parent=1 // pred_check_branch
      %25 = sbr.rel (0) target = $region5
    $region4: #{ans_navie_trans_forward.1} parent=1 // pred_region
      _
    $region5: #{ans_navie_trans_forward.1} parent=1 // pred_fallthru
      _
    // Predicated region
    $region6: #{ans_navie_trans_forward.1} parent=1 // pred_check
      _
    $region7: #{ans_navie_trans_forward.1} parent=1 // pred_check_branch
      %27 = sbr.rel (0) target = $region9
    $region8: #{ans_navie_trans_forward.1} parent=1 // pred_region
      %s29 = ssub.s32 6144, 6144
      %30 = vsyncadd [#allocation8], %s29
      %s31 = sshll.u32 [#allocation7], 4
      %s32 = int_to_ptr.vmem [resolvable:$true] %s31
      %37 = dma.hbm_to_vmem [thread:$0]  %s3, 6144, %s32, [#allocation8], 384, 384, 24
    $region9: #{ans_navie_trans_forward.1} parent=1 // pred_fallthru
      _
    // Predicated region
    $region10: #{ans_navie_trans_forward.1} parent=1 // pred_check
      _
    $region11: #{ans_navie_trans_forward.1} parent=1 // pred_check_branch
      %39 = sbr.rel (0) target = $region13
    $region12: #{ans_navie_trans_forward.1} parent=1 // pred_region
      %s41 = ssub.s32 6144, 6144
      %42 = vsyncadd [#allocation10], %s41
      %s43 = sshll.u32 [#allocation9], 4
      %s44 = int_to_ptr.vmem [resolvable:$true] %s43
      %49 = dma.hbm_to_vmem [thread:$0]  %s4, 6144, %s44, [#allocation10], 384, 384, 24
    $region13: #{ans_navie_trans_forward.1} parent=1 // pred_fallthru
      _
    // Predicated region
    $region14: #{ans_navie_trans_forward.1} parent=1 // pred_check
      _
    $region15: #{ans_navie_trans_forward.1} parent=1 // pred_check_branch
      %51 = sbr.rel (0) target = $region17
    $region16: #{ans_navie_trans_forward.1} parent=1 // pred_region
      _
    $region17: #{ans_navie_trans_forward.1} parent=1 // pred_fallthru
      _
    // Predicated region
    $region18: #{ans_navie_trans_forward.1} parent=1 // pred_check
      _
    $region19: #{ans_navie_trans_forward.1} parent=1 // pred_check_branch
      %53 = sbr.rel (0) target = $region21
    $region20: #{ans_navie_trans_forward.1} parent=1 // pred_region
      _
    $region21: #{ans_navie_trans_forward.1} parent=1 // pred_fallthru
      _
    // Predicated region
    $region22: #{ans_navie_trans_forward.1} parent=1 // pred_check
      _
    $region23: #{ans_navie_trans_forward.1} parent=1 // pred_check_branch
      %55 = sbr.rel (0) target = $region25
    $region24: #{ans_navie_trans_forward.1} parent=1 // pred_region
      %s57 = ssub.s32 2048, 2048
      %58 = vsyncadd [#allocation10], %s57
      %s59 = sshll.u32 [#allocation11], 4
      %s60 = int_to_ptr.vmem [resolvable:$true] %s59
      %65 = dma.hbm_to_vmem [thread:$0]  %s7, 2048, %s60, [#allocation10], 128, 128, 8
    $region25: #{ans_navie_trans_forward.1} parent=1 // pred_fallthru
      _
    // Predicated region
    $region26: #{ans_navie_trans_forward.1} parent=1 // pred_check
      _
    $region27: #{ans_navie_trans_forward.1} parent=1 // pred_check_branch
      %67 = sbr.rel (0) target = $region29
    $region28: #{ans_navie_trans_forward.1} parent=1 // pred_region
      _
    $region29: #{ans_navie_trans_forward.1} parent=1 // pred_fallthru
      _
    // Predicated region
    $region30: #{ans_navie_trans_forward.1} parent=1 // pred_check
      _
    $region31: #{ans_navie_trans_forward.1} parent=1 // pred_check_branch
      %69 = sbr.rel (0) target = $region33
    $region32: #{ans_navie_trans_forward.1} parent=1 // pred_region
      %70 = dma.done [#allocation8], 6144
    $region33: #{ans_navie_trans_forward.1} parent=1 // pred_fallthru
      _
    // Predicated region
    $region34: #{ans_navie_trans_forward.1} parent=1 // pred_check
      _
    $region35: #{ans_navie_trans_forward.1} parent=1 // pred_check_branch
      %72 = sbr.rel (0) target = $region37
    $region36: #{ans_navie_trans_forward.1} parent=1 // pred_region
      %73 = dma.done [#allocation10], 6144
    $region37: #{ans_navie_trans_forward.1} parent=1 // pred_fallthru
      _
    // Predicated region
    $region38: #{ans_navie_trans_forward.1} parent=1 // pred_check
      _
    $region39: #{ans_navie_trans_forward.1} parent=1 // pred_check_branch
      %75 = sbr.rel (0) target = $region41
    $region40: #{ans_navie_trans_forward.1} parent=1 // pred_region
      %76 = dma.done [#allocation10], 2048
    $region41: #{ans_navie_trans_forward.1} parent=1 // pred_fallthru
      _
    %p77 = scmp.eq.s32.totalorder 0, 0
    // Predicated region
    $region42: #{ans_navie_trans_forward.1} parent=1 // pred_check
      %p78 = pneg %p77
    $region43: #{ans_navie_trans_forward.1} parent=1 // pred_check_branch
      %80 = sbr.rel (%p78) target = $region45
    $region44: #{ans_navie_trans_forward.1} parent=1 // pred_region
      %s81 = sld [smem:[#allocation6]]
      %s82 = sld [smem:[#allocation6 + $0x1]]
      %s83 = sld [smem:[#allocation6 + $0x2]]
      %s84 = sld [smem:[#allocation6 + $0x3]]
      %s85 = smul.addr %s81, 16
      %s86 = scalar_lea.hbm %s1, %s85
      // Predicated region
      $region46: #{ans_navie_trans_forward.1} parent=44 // pred_check
        _
      $region47: #{ans_navie_trans_forward.1} parent=44 // pred_check_branch
        %88 = sbr.rel target = $region49
      $region48: #{ans_navie_trans_forward.1} parent=44 // pred_region
        %89 = sst [smem:[#allocation14]] [#allocation13]
        %90 = sst [smem:[#allocation15]] [#allocation12]
      $region49: #{ans_navie_trans_forward.1} parent=44 // pred_fallthru
        _
      %92 = shalt.err (0)
      %s94 = sshll.u32 [#allocation2], 4
      %s95 = int_to_ptr.vmem [resolvable:$true] %s94
      %97 = dma.hbm_to_vmem [thread:$0]  %s86, 16, %s95, [#allocation4]
      %s98 = smul.addr %s82, 16
      %s99 = scalar_lea.hbm %s1, %s98
      %s100 = scalar_lea.vmem [#allocation2], 1
      %s101 = scalar_lea.sflag [#allocation4], 1
      // Predicated region
      $region50: #{ans_navie_trans_forward.1} parent=44 // pred_check
        _
      $region51: #{ans_navie_trans_forward.1} parent=44 // pred_check_branch
        %103 = sbr.rel target = $region53
      $region52: #{ans_navie_trans_forward.1} parent=44 // pred_region
        %104 = sst [smem:[#allocation14]] [#allocation17]
        %105 = sst [smem:[#allocation15]] [#allocation16]
      $region53: #{ans_navie_trans_forward.1} parent=44 // pred_fallthru
        _
      %107 = shalt.err (0)
      %s109 = sshll.u32 %s100, 4
      %s110 = int_to_ptr.vmem [resolvable:$true] %s109
      %112 = dma.hbm_to_vmem [thread:$0]  %s99, 16, %s110, %s101
      %s113 = smul.addr %s83, 16
      %s114 = scalar_lea.hbm %s1, %s113
      %s115 = scalar_lea.vmem [#allocation2], 2
      %s116 = scalar_lea.sflag [#allocation4], 2
      // Predicated region
      $region54: #{ans_navie_trans_forward.1} parent=44 // pred_check
        _
      $region55: #{ans_navie_trans_forward.1} parent=44 // pred_check_branch
        %118 = sbr.rel target = $region57
      $region56: #{ans_navie_trans_forward.1} parent=44 // pred_region
        %119 = sst [smem:[#allocation14]] [#allocation19]
        %120 = sst [smem:[#allocation15]] [#allocation18]
      $region57: #{ans_navie_trans_forward.1} parent=44 // pred_fallthru
        _
      %122 = shalt.err (0)
      %s124 = sshll.u32 %s115, 4
      %s125 = int_to_ptr.vmem [resolvable:$true] %s124
      %127 = dma.hbm_to_vmem [thread:$0]  %s114, 16, %s125, %s116
      %s128 = smul.addr %s84, 16
      %s129 = scalar_lea.hbm %s1, %s128
      %s130 = scalar_lea.vmem [#allocation2], 3
      %s131 = scalar_lea.sflag [#allocation4], 3
      // Predicated region
      $region58: #{ans_navie_trans_forward.1} parent=44 // pred_check
        _
      $region59: #{ans_navie_trans_forward.1} parent=44 // pred_check_branch
        %133 = sbr.rel target = $region61
      $region60: #{ans_navie_trans_forward.1} parent=44 // pred_region
        %134 = sst [smem:[#allocation14]] [#allocation21]
        %135 = sst [smem:[#allocation15]] [#allocation20]
      $region61: #{ans_navie_trans_forward.1} parent=44 // pred_fallthru
        _
      %137 = shalt.err (0)
      %s139 = sshll.u32 %s130, 4
      %s140 = int_to_ptr.vmem [resolvable:$true] %s139
      %142 = dma.hbm_to_vmem [thread:$0]  %s129, 16, %s140, %s131
      %s143 = smul.u32 1, 1
      %s144 = sshll.u32 %s143, 4
      %145 = dma.done [#allocation4], %s144
      %s146 = sshll.u32 %s143, 4
      %147 = dma.done %s101, %s146
      %s148 = sshll.u32 %s143, 4
      %149 = dma.done %s116, %s148
      %s150 = sshll.u32 %s143, 4
      %151 = dma.done %s131, %s150
      %v152 = vld [vmem:[#allocation2] sm:$0xff]
      %v153 = vld [vmem:[%s2] sm:$0xff]
      %v154 = vld [vmem:[#allocation7] sm:$0xff]
      %v155 = vld [vmem:[#allocation7 + $0x8] sm:$0xff]
      %v156 = vld [vmem:[#allocation7 + $0x10] sm:$0xff]
      %v157 = vld [vmem:[#allocation7 + $0x18] sm:$0xff]
      %v158 = vld [vmem:[#allocation7 + $0x20] sm:$0xff]
      %v159 = vld [vmem:[#allocation7 + $0x28] sm:$0xff]
      %v160 = vld [vmem:[#allocation7 + $0x30] sm:$0xff]
      %v161 = vld [vmem:[#allocation7 + $0x38] sm:$0xff]
      %v162 = vld [vmem:[#allocation7 + $0x40] sm:$0xff]
      %v163 = vld [vmem:[#allocation7 + $0x48] sm:$0xff]
      %v164 = vld [vmem:[#allocation7 + $0x50] sm:$0xff]
      %v165 = vld [vmem:[#allocation7 + $0x58] sm:$0xff]
      %v166 = vld [vmem:[#allocation7 + $0x60] sm:$0xff]
      %v167 = vld [vmem:[#allocation7 + $0x68] sm:$0xff]
      %v168 = vld [vmem:[#allocation7 + $0x70] sm:$0xff]
      %v169 = vld [vmem:[#allocation7 + $0x78] sm:$0xff]
      %v170 = vld [vmem:[#allocation7 + $0x80] sm:$0xff]
      %v171 = vld [vmem:[#allocation7 + $0x88] sm:$0xff]
      %v172 = vld [vmem:[#allocation7 + $0x90] sm:$0xff]
      %v173 = vld [vmem:[#allocation7 + $0x98] sm:$0xff]
      %v174 = vld [vmem:[#allocation7 + $0xa0] sm:$0xff]
      %v175 = vld [vmem:[#allocation7 + $0xa8] sm:$0xff]
      %v176 = vld [vmem:[#allocation7 + $0xb0] sm:$0xff]
      %v177 = vld [vmem:[#allocation7 + $0xb8] sm:$0xff]
      %v178 = vld [vmem:[#allocation7 + $0xc0] sm:$0xff]
      %v179 = vld [vmem:[#allocation7 + $0xc8] sm:$0xff]
      %v180 = vld [vmem:[#allocation7 + $0xd0] sm:$0xff]
      %v181 = vld [vmem:[#allocation7 + $0xd8] sm:$0xff]
      %v182 = vld [vmem:[#allocation7 + $0xe0] sm:$0xff]
      %v183 = vld [vmem:[#allocation7 + $0xe8] sm:$0xff]
      %v184 = vld [vmem:[#allocation7 + $0xf0] sm:$0xff]
      %v185 = vld [vmem:[#allocation7 + $0xf8] sm:$0xff]
      %v186 = vld [vmem:[#allocation7 + $0x100] sm:$0xff]
      %v187 = vld [vmem:[#allocation7 + $0x108] sm:$0xff]
      %v188 = vld [vmem:[#allocation7 + $0x110] sm:$0xff]
      %v189 = vld [vmem:[#allocation7 + $0x118] sm:$0xff]
      %v190 = vld [vmem:[#allocation7 + $0x120] sm:$0xff]
      %v191 = vld [vmem:[#allocation7 + $0x128] sm:$0xff]
      %v192 = vld [vmem:[#allocation7 + $0x130] sm:$0xff]
      %v193 = vld [vmem:[#allocation7 + $0x138] sm:$0xff]
      %v194 = vld [vmem:[#allocation7 + $0x140] sm:$0xff]
      %v195 = vld [vmem:[#allocation7 + $0x148] sm:$0xff]
      %v196 = vld [vmem:[#allocation7 + $0x150] sm:$0xff]
      %v197 = vld [vmem:[#allocation7 + $0x158] sm:$0xff]
      %v198 = vld [vmem:[#allocation7 + $0x160] sm:$0xff]
      %v199 = vld [vmem:[#allocation7 + $0x168] sm:$0xff]
      %v200 = vld [vmem:[#allocation7 + $0x170] sm:$0xff]
      %v201 = vld [vmem:[#allocation7 + $0x178] sm:$0xff]
      %v202 = vld [vmem:[%s5] sm:$0x7]
      %v204 = vlaneseq
      %v205 = vshrl.u32 %v204, 7
      %v206 = vsub.s32 0, %v205
      %v207 = vrot.slane %v202, %v206
      %v208 = vlaneseq
      %v209 = vshrl.u32 %v208, 7
      %v210 = vsub.s32 1, %v209
      %v211 = vrot.slane %v202, %v210
      %v212 = vlaneseq
      %v213 = vshrl.u32 %v212, 7
      %v214 = vsub.s32 2, %v213
      %v215 = vrot.slane %v202, %v214
      %219 = vmatprep.subr.mxu0 %v155
      %220 = vmatpush1.msra.mxu0 %v154
      %221 = vmatprep.subr.mxu0 %v158
      %222 = vmatpush1.msra.mxu0 %v157
      %223 = vmatprep.subr.mxu0 %v161
      %224 = vmatpush1.msra.mxu0 %v160
      %225 = vmatprep.subr.mxu0 %v164
      %226 = vmatpush1.msra.mxu0 %v163
      %227 = vmatprep.subr.mxu0 %v167
      %228 = vmatpush1.msra.mxu0 %v166
      %229 = vmatprep.subr.mxu0 %v170
      %230 = vmatpush1.msra.mxu0 %v169
      %231 = vmatprep.subr.mxu0 %v173
      %232 = vmatpush1.msra.mxu0 %v172
      %233 = vmatprep.subr.mxu0 %v176
      %234 = vmatpush1.msra.mxu0 %v175
      %235 = vmatprep.subr.mxu0 %v179
      %236 = vmatpush1.msra.mxu0 %v178
      %237 = vmatprep.subr.mxu0 %v182
      %238 = vmatpush1.msra.mxu0 %v181
      %239 = vmatprep.subr.mxu0 %v185
      %240 = vmatpush1.msra.mxu0 %v184
      %241 = vmatprep.subr.mxu0 %v188
      %242 = vmatpush1.msra.mxu0 %v187
      %243 = vmatprep.subr.mxu0 %v191
      %244 = vmatpush1.msra.mxu0 %v190
      %245 = vmatprep.subr.mxu0 %v194
      %246 = vmatpush1.msra.mxu0 %v193
      %247 = vmatprep.subr.mxu0 %v197
      %248 = vmatpush1.msra.mxu0 %v196
      %249 = vmatprep.subr.mxu0 %v200
      %250 = vmatpush1.msra.mxu0 %v199
      %251 = vmatprep.subr.mxu0 0.0
      %252 = vmatpush1.msra.mxu0 0.0
      %253 = vmatprep.subr.mxu0 0.0
      %254 = vmatpush1.msra.mxu0 0.0
      %255 = vmatprep.subr.mxu0 0.0
      %256 = vmatpush1.msra.mxu0 0.0
      %257 = vmatprep.subr.mxu0 0.0
      %258 = vmatpush1.msra.mxu0 0.0
      %259 = vmatprep.subr.mxu0 0.0
      %260 = vmatpush1.msra.mxu0 0.0
      %261 = vmatprep.subr.mxu0 0.0
      %262 = vmatpush1.msra.mxu0 0.0
      %263 = vmatprep.subr.mxu0 0.0
      %264 = vmatpush1.msra.mxu0 0.0
      %265 = vmatprep.subr.mxu0 0.0
      %266 = vmatpush1.msra.mxu0 0.0
      %267 = vmatprep.subr.mxu0 0.0
      %268 = vmatpush1.msra.mxu0 0.0
      %269 = vmatprep.subr.mxu0 0.0
      %270 = vmatpush1.msra.mxu0 0.0
      %271 = vmatprep.subr.mxu0 0.0
      %272 = vmatpush1.msra.mxu0 0.0
      %273 = vmatprep.subr.mxu0 0.0
      %274 = vmatpush1.msra.mxu0 0.0
      %275 = vmatprep.subr.mxu0 0.0
      %276 = vmatpush1.msra.mxu0 0.0
      %277 = vmatprep.subr.mxu0 0.0
      %278 = vmatpush1.msra.mxu0 0.0
      %279 = vmatprep.subr.mxu0 0.0
      %280 = vmatpush1.msra.mxu0 0.0
      %281 = vmatprep.subr.mxu0 0.0
      %282 = vmatpush1.msra.mxu0 0.0
      %283 = vmatprep.mubr.f32.mxu0 0.0
      %284 = vmatmul.mubr.f32.gmra.mrb[0].mxu0 %v152
      %v285 = vpop.f32.mrb[0].mxu0
      %v286 = vadd.f32 %v207, %v285
      %v287 = vpop.f32.mrb[0].mxu0
      %v288 = vadd.f32 %v211, %v287
      %289 = vdwg.mxu0
      %290 = vmatprep.subr.mxu0 0.0
      %291 = vmatpush1.msra.mxu0 %v156
      %292 = vmatprep.subr.mxu0 0.0
      %293 = vmatpush1.msra.mxu0 %v159
      %294 = vmatprep.subr.mxu0 0.0
      %295 = vmatpush1.msra.mxu0 %v162
      %296 = vmatprep.subr.mxu0 0.0
      %297 = vmatpush1.msra.mxu0 %v165
      %298 = vmatprep.subr.mxu0 0.0
      %299 = vmatpush1.msra.mxu0 %v168
      %300 = vmatprep.subr.mxu0 0.0
      %301 = vmatpush1.msra.mxu0 %v171
      %302 = vmatprep.subr.mxu0 0.0
      %303 = vmatpush1.msra.mxu0 %v174
      %304 = vmatprep.subr.mxu0 0.0
      %305 = vmatpush1.msra.mxu0 %v177
      %306 = vmatprep.subr.mxu0 0.0
      %307 = vmatpush1.msra.mxu0 %v180
      %308 = vmatprep.subr.mxu0 0.0
      %309 = vmatpush1.msra.mxu0 %v183
      %310 = vmatprep.subr.mxu0 0.0
      %311 = vmatpush1.msra.mxu0 %v186
      %312 = vmatprep.subr.mxu0 0.0
      %313 = vmatpush1.msra.mxu0 %v189
      %314 = vmatprep.subr.mxu0 0.0
      %315 = vmatpush1.msra.mxu0 %v192
      %316 = vmatprep.subr.mxu0 0.0
      %317 = vmatpush1.msra.mxu0 %v195
      %318 = vmatprep.subr.mxu0 0.0
      %319 = vmatpush1.msra.mxu0 %v198
      %320 = vmatprep.subr.mxu0 0.0
      %321 = vmatpush1.msra.mxu0 %v201
      %322 = vmatprep.subr.mxu0 0.0
      %323 = vmatpush1.msra.mxu0 0.0
      %324 = vmatprep.subr.mxu0 0.0
      %325 = vmatpush1.msra.mxu0 0.0
      %326 = vmatprep.subr.mxu0 0.0
      %327 = vmatpush1.msra.mxu0 0.0
      %328 = vmatprep.subr.mxu0 0.0
      %329 = vmatpush1.msra.mxu0 0.0
      %330 = vmatprep.subr.mxu0 0.0
      %331 = vmatpush1.msra.mxu0 0.0
      %332 = vmatprep.subr.mxu0 0.0
      %333 = vmatpush1.msra.mxu0 0.0
      %334 = vmatprep.subr.mxu0 0.0
      %335 = vmatpush1.msra.mxu0 0.0
      %336 = vmatprep.subr.mxu0 0.0
      %337 = vmatpush1.msra.mxu0 0.0
      %338 = vmatprep.subr.mxu0 0.0
      %339 = vmatpush1.msra.mxu0 0.0
      %340 = vmatprep.subr.mxu0 0.0
      %341 = vmatpush1.msra.mxu0 0.0
      %342 = vmatprep.subr.mxu0 0.0
      %343 = vmatpush1.msra.mxu0 0.0
      %344 = vmatprep.subr.mxu0 0.0
      %345 = vmatpush1.msra.mxu0 0.0
      %346 = vmatprep.subr.mxu0 0.0
      %347 = vmatpush1.msra.mxu0 0.0
      %348 = vmatprep.subr.mxu0 0.0
      %349 = vmatpush1.msra.mxu0 0.0
      %350 = vmatprep.subr.mxu0 0.0
      %351 = vmatpush1.msra.mxu0 0.0
      %352 = vmatprep.subr.mxu0 0.0
      %353 = vmatpush1.msra.mxu0 0.0
      %354 = vmatprep.mubr.f32.mxu0 0.0
      %355 = vmatmul.mubr.f32.gmra.mrb[0].mxu0 %v152
      %v356 = vpop.f32.mrb[0].mxu0
      %v357 = vadd.f32 %v215, %v356
      %v358 = vpop.f32.mrb[0].mxu0
      %359 = vdwg.mxu0
      %v360 = vld [vmem:[#allocation9] sm:$0xff]
      %v361 = vld [vmem:[#allocation9 + $0x8] sm:$0xff]
      %v362 = vld [vmem:[#allocation9 + $0x10] sm:$0xff]
      %v363 = vld [vmem:[#allocation9 + $0x18] sm:$0xff]
      %v364 = vld [vmem:[#allocation9 + $0x20] sm:$0xff]
      %v365 = vld [vmem:[#allocation9 + $0x28] sm:$0xff]
      %v366 = vld [vmem:[#allocation9 + $0x30] sm:$0xff]
      %v367 = vld [vmem:[#allocation9 + $0x38] sm:$0xff]
      %v368 = vld [vmem:[#allocation9 + $0x40] sm:$0xff]
      %v369 = vld [vmem:[#allocation9 + $0x48] sm:$0xff]
      %v370 = vld [vmem:[#allocation9 + $0x50] sm:$0xff]
      %v371 = vld [vmem:[#allocation9 + $0x58] sm:$0xff]
      %v372 = vld [vmem:[#allocation9 + $0x60] sm:$0xff]
      %v373 = vld [vmem:[#allocation9 + $0x68] sm:$0xff]
      %v374 = vld [vmem:[#allocation9 + $0x70] sm:$0xff]
      %v375 = vld [vmem:[#allocation9 + $0x78] sm:$0xff]
      %v376 = vld [vmem:[#allocation9 + $0x80] sm:$0xff]
      %v377 = vld [vmem:[#allocation9 + $0x88] sm:$0xff]
      %v378 = vld [vmem:[#allocation9 + $0x90] sm:$0xff]
      %v379 = vld [vmem:[#allocation9 + $0x98] sm:$0xff]
      %v380 = vld [vmem:[#allocation9 + $0xa0] sm:$0xff]
      %v381 = vld [vmem:[#allocation9 + $0xa8] sm:$0xff]
      %v382 = vld [vmem:[#allocation9 + $0xb0] sm:$0xff]
      %v383 = vld [vmem:[#allocation9 + $0xb8] sm:$0xff]
      %v384 = vld [vmem:[#allocation9 + $0xc0] sm:$0xff]
      %v385 = vld [vmem:[#allocation9 + $0xc8] sm:$0xff]
      %v386 = vld [vmem:[#allocation9 + $0xd0] sm:$0xff]
      %v387 = vld [vmem:[#allocation9 + $0xd8] sm:$0xff]
      %v388 = vld [vmem:[#allocation9 + $0xe0] sm:$0xff]
      %v389 = vld [vmem:[#allocation9 + $0xe8] sm:$0xff]
      %v390 = vld [vmem:[#allocation9 + $0xf0] sm:$0xff]
      %v391 = vld [vmem:[#allocation9 + $0xf8] sm:$0xff]
      %v392 = vld [vmem:[#allocation9 + $0x100] sm:$0xff]
      %v393 = vld [vmem:[#allocation9 + $0x108] sm:$0xff]
      %v394 = vld [vmem:[#allocation9 + $0x110] sm:$0xff]
      %v395 = vld [vmem:[#allocation9 + $0x118] sm:$0xff]
      %v396 = vld [vmem:[#allocation9 + $0x120] sm:$0xff]
      %v397 = vld [vmem:[#allocation9 + $0x128] sm:$0xff]
      %v398 = vld [vmem:[#allocation9 + $0x130] sm:$0xff]
      %v399 = vld [vmem:[#allocation9 + $0x138] sm:$0xff]
      %v400 = vld [vmem:[#allocation9 + $0x140] sm:$0xff]
      %v401 = vld [vmem:[#allocation9 + $0x148] sm:$0xff]
      %v402 = vld [vmem:[#allocation9 + $0x150] sm:$0xff]
      %v403 = vld [vmem:[#allocation9 + $0x158] sm:$0xff]
      %v404 = vld [vmem:[#allocation9 + $0x160] sm:$0xff]
      %v405 = vld [vmem:[#allocation9 + $0x168] sm:$0xff]
      %v406 = vld [vmem:[#allocation9 + $0x170] sm:$0xff]
      %v407 = vld [vmem:[#allocation9 + $0x178] sm:$0xff]
      %v408 = vld [vmem:[%s6] sm:$0x7]
      %v410 = vlaneseq
      %v411 = vshrl.u32 %v410, 7
      %v412 = vsub.s32 0, %v411
      %v413 = vrot.slane %v408, %v412
      %v414 = vlaneseq
      %v415 = vshrl.u32 %v414, 7
      %v416 = vsub.s32 1, %v415
      %v417 = vrot.slane %v408, %v416
      %v418 = vlaneseq
      %v419 = vshrl.u32 %v418, 7
      %v420 = vsub.s32 2, %v419
      %v421 = vrot.slane %v408, %v420
      %425 = vmatprep.subr.mxu0 %v361
      %426 = vmatpush1.msra.mxu0 %v360
      %427 = vmatprep.subr.mxu0 %v364
      %428 = vmatpush1.msra.mxu0 %v363
      %429 = vmatprep.subr.mxu0 %v367
      %430 = vmatpush1.msra.mxu0 %v366
      %431 = vmatprep.subr.mxu0 %v370
      %432 = vmatpush1.msra.mxu0 %v369
      %433 = vmatprep.subr.mxu0 %v373
      %434 = vmatpush1.msra.mxu0 %v372
      %435 = vmatprep.subr.mxu0 %v376
      %436 = vmatpush1.msra.mxu0 %v375
      %437 = vmatprep.subr.mxu0 %v379
      %438 = vmatpush1.msra.mxu0 %v378
      %439 = vmatprep.subr.mxu0 %v382
      %440 = vmatpush1.msra.mxu0 %v381
      %441 = vmatprep.subr.mxu0 %v385
      %442 = vmatpush1.msra.mxu0 %v384
      %443 = vmatprep.subr.mxu0 %v388
      %444 = vmatpush1.msra.mxu0 %v387
      %445 = vmatprep.subr.mxu0 %v391
      %446 = vmatpush1.msra.mxu0 %v390
      %447 = vmatprep.subr.mxu0 %v394
      %448 = vmatpush1.msra.mxu0 %v393
      %449 = vmatprep.subr.mxu0 %v397
      %450 = vmatpush1.msra.mxu0 %v396
      %451 = vmatprep.subr.mxu0 %v400
      %452 = vmatpush1.msra.mxu0 %v399
      %453 = vmatprep.subr.mxu0 %v403
      %454 = vmatpush1.msra.mxu0 %v402
      %455 = vmatprep.subr.mxu0 %v406
      %456 = vmatpush1.msra.mxu0 %v405
      %457 = vmatprep.subr.mxu0 0.0
      %458 = vmatpush1.msra.mxu0 0.0
      %459 = vmatprep.subr.mxu0 0.0
      %460 = vmatpush1.msra.mxu0 0.0
      %461 = vmatprep.subr.mxu0 0.0
      %462 = vmatpush1.msra.mxu0 0.0
      %463 = vmatprep.subr.mxu0 0.0
      %464 = vmatpush1.msra.mxu0 0.0
      %465 = vmatprep.subr.mxu0 0.0
      %466 = vmatpush1.msra.mxu0 0.0
      %467 = vmatprep.subr.mxu0 0.0
      %468 = vmatpush1.msra.mxu0 0.0
      %469 = vmatprep.subr.mxu0 0.0
      %470 = vmatpush1.msra.mxu0 0.0
      %471 = vmatprep.subr.mxu0 0.0
      %472 = vmatpush1.msra.mxu0 0.0
      %473 = vmatprep.subr.mxu0 0.0
      %474 = vmatpush1.msra.mxu0 0.0
      %475 = vmatprep.subr.mxu0 0.0
      %476 = vmatpush1.msra.mxu0 0.0
      %477 = vmatprep.subr.mxu0 0.0
      %478 = vmatpush1.msra.mxu0 0.0
      %479 = vmatprep.subr.mxu0 0.0
      %480 = vmatpush1.msra.mxu0 0.0
      %481 = vmatprep.subr.mxu0 0.0
      %482 = vmatpush1.msra.mxu0 0.0
      %483 = vmatprep.subr.mxu0 0.0
      %484 = vmatpush1.msra.mxu0 0.0
      %485 = vmatprep.subr.mxu0 0.0
      %486 = vmatpush1.msra.mxu0 0.0
      %487 = vmatprep.subr.mxu0 0.0
      %488 = vmatpush1.msra.mxu0 0.0
      %489 = vmatprep.mubr.f32.mxu0 0.0
      %490 = vmatmul.mubr.f32.gmra.mrb[0].mxu0 %v153
      %v491 = vpop.f32.mrb[0].mxu0
      %v492 = vadd.f32 %v413, %v491
      %v493 = vpop.f32.mrb[0].mxu0
      %v494 = vadd.f32 %v417, %v493
      %495 = vdwg.mxu0
      %496 = vmatprep.subr.mxu0 0.0
      %497 = vmatpush1.msra.mxu0 %v362
      %498 = vmatprep.subr.mxu0 0.0
      %499 = vmatpush1.msra.mxu0 %v365
      %500 = vmatprep.subr.mxu0 0.0
      %501 = vmatpush1.msra.mxu0 %v368
      %502 = vmatprep.subr.mxu0 0.0
      %503 = vmatpush1.msra.mxu0 %v371
      %504 = vmatprep.subr.mxu0 0.0
      %505 = vmatpush1.msra.mxu0 %v374
      %506 = vmatprep.subr.mxu0 0.0
      %507 = vmatpush1.msra.mxu0 %v377
      %508 = vmatprep.subr.mxu0 0.0
      %509 = vmatpush1.msra.mxu0 %v380
      %510 = vmatprep.subr.mxu0 0.0
      %511 = vmatpush1.msra.mxu0 %v383
      %512 = vmatprep.subr.mxu0 0.0
      %513 = vmatpush1.msra.mxu0 %v386
      %514 = vmatprep.subr.mxu0 0.0
      %515 = vmatpush1.msra.mxu0 %v389
      %516 = vmatprep.subr.mxu0 0.0
      %517 = vmatpush1.msra.mxu0 %v392
      %518 = vmatprep.subr.mxu0 0.0
      %519 = vmatpush1.msra.mxu0 %v395
      %520 = vmatprep.subr.mxu0 0.0
      %521 = vmatpush1.msra.mxu0 %v398
      %522 = vmatprep.subr.mxu0 0.0
      %523 = vmatpush1.msra.mxu0 %v401
      %524 = vmatprep.subr.mxu0 0.0
      %525 = vmatpush1.msra.mxu0 %v404
      %526 = vmatprep.subr.mxu0 0.0
      %527 = vmatpush1.msra.mxu0 %v407
      %528 = vmatprep.subr.mxu0 0.0
      %529 = vmatpush1.msra.mxu0 0.0
      %530 = vmatprep.subr.mxu0 0.0
      %531 = vmatpush1.msra.mxu0 0.0
      %532 = vmatprep.subr.mxu0 0.0
      %533 = vmatpush1.msra.mxu0 0.0
      %534 = vmatprep.subr.mxu0 0.0
      %535 = vmatpush1.msra.mxu0 0.0
      %536 = vmatprep.subr.mxu0 0.0
      %537 = vmatpush1.msra.mxu0 0.0
      %538 = vmatprep.subr.mxu0 0.0
      %539 = vmatpush1.msra.mxu0 0.0
      %540 = vmatprep.subr.mxu0 0.0
      %541 = vmatpush1.msra.mxu0 0.0
      %542 = vmatprep.subr.mxu0 0.0
      %543 = vmatpush1.msra.mxu0 0.0
      %544 = vmatprep.subr.mxu0 0.0
      %545 = vmatpush1.msra.mxu0 0.0
      %546 = vmatprep.subr.mxu0 0.0
      %547 = vmatpush1.msra.mxu0 0.0
      %548 = vmatprep.subr.mxu0 0.0
      %549 = vmatpush1.msra.mxu0 0.0
      %550 = vmatprep.subr.mxu0 0.0
      %551 = vmatpush1.msra.mxu0 0.0
      %552 = vmatprep.subr.mxu0 0.0
      %553 = vmatpush1.msra.mxu0 0.0
      %554 = vmatprep.subr.mxu0 0.0
      %555 = vmatpush1.msra.mxu0 0.0
      %556 = vmatprep.subr.mxu0 0.0
      %557 = vmatpush1.msra.mxu0 0.0
      %558 = vmatprep.subr.mxu0 0.0
      %559 = vmatpush1.msra.mxu0 0.0
      %560 = vmatprep.mubr.f32.mxu0 0.0
      %561 = vmatmul.mubr.f32.gmra.mrb[0].mxu0 %v153
      %v562 = vpop.f32.mrb[0].mxu0
      %v563 = vadd.f32 %v421, %v562
      %v564 = vpop.f32.mrb[0].mxu0
      %565 = vdwg.mxu0
      %v566 = vadd.f32 %v286, %v492
      %v567 = vxor.u32 %v566, 2147483648
      %v568 = vmul.f32 %v567, 1.442695
      %v569 = vpow.pop %v568
      %v570 = vadd.f32 %v569, 1.0
      %v571 = vrcp.pop %v570
      %v572 = vmul.f32 1.0, %v571
      %v573 = vadd.f32 %v288, %v494
      %v574 = vxor.u32 %v573, 2147483648
      %v575 = vmul.f32 %v574, 1.442695
      %v576 = vpow.pop %v575
      %v577 = vadd.f32 %v576, 1.0
      %v578 = vrcp.pop %v577
      %v579 = vmul.f32 1.0, %v578
      %v580 = vmul.f32 %v572, %v563
      %v581 = vadd.f32 %v357, %v580
      %v582 = vtanh.pop %v581
      %v583 = vsub.f32 1.0, %v579
      %v584 = vmul.f32 %v583, %v582
      %v585 = vmul.f32 %v579, %v153
      %v586 = vadd.f32 %v584, %v585
      %587 = vst [vmem:[#allocation3] sm:$0xff] %v586
      %588 = vst [vmem:[%s10] sm:$0xff] %v586
    $region45: #{ans_navie_trans_forward.1} parent=1 // pred_fallthru
      _
    %v589 = vld [vmem:[#allocation3] sm:$0xff]
    %v590 = vld [vmem:[#allocation11] sm:$0xff]
    %v591 = vld [vmem:[#allocation11 + $0x8] sm:$0xff]
    %v592 = vld [vmem:[#allocation11 + $0x10] sm:$0xff]
    %v593 = vld [vmem:[#allocation11 + $0x18] sm:$0xff]
    %v594 = vld [vmem:[#allocation11 + $0x20] sm:$0xff]
    %v595 = vld [vmem:[#allocation11 + $0x28] sm:$0xff]
    %v596 = vld [vmem:[#allocation11 + $0x30] sm:$0xff]
    %v597 = vld [vmem:[#allocation11 + $0x38] sm:$0xff]
    %v598 = vld [vmem:[#allocation11 + $0x40] sm:$0xff]
    %v599 = vld [vmem:[#allocation11 + $0x48] sm:$0xff]
    %v600 = vld [vmem:[#allocation11 + $0x50] sm:$0xff]
    %v601 = vld [vmem:[#allocation11 + $0x58] sm:$0xff]
    %v602 = vld [vmem:[#allocation11 + $0x60] sm:$0xff]
    %v603 = vld [vmem:[#allocation11 + $0x68] sm:$0xff]
    %v604 = vld [vmem:[#allocation11 + $0x70] sm:$0xff]
    %v605 = vld [vmem:[#allocation11 + $0x78] sm:$0xff]
    %v606 = vld [vmem:[%s8] sm:$0x1]
    %v608 = vlaneseq
    %v609 = vshrl.u32 %v608, 7
    %v610 = vsub.s32 0, %v609
    %v611 = vrot.slane %v606, %v610
    %613 = vmatprep.subr.mxu0 0.0
    %614 = vmatpush1.msra.mxu0 %v590
    %615 = vmatprep.subr.mxu0 0.0
    %616 = vmatpush1.msra.mxu0 %v591
    %617 = vmatprep.subr.mxu0 0.0
    %618 = vmatpush1.msra.mxu0 %v592
    %619 = vmatprep.subr.mxu0 0.0
    %620 = vmatpush1.msra.mxu0 %v593
    %621 = vmatprep.subr.mxu0 0.0
    %622 = vmatpush1.msra.mxu0 %v594
    %623 = vmatprep.subr.mxu0 0.0
    %624 = vmatpush1.msra.mxu0 %v595
    %625 = vmatprep.subr.mxu0 0.0
    %626 = vmatpush1.msra.mxu0 %v596
    %627 = vmatprep.subr.mxu0 0.0
    %628 = vmatpush1.msra.mxu0 %v597
    %629 = vmatprep.subr.mxu0 0.0
    %630 = vmatpush1.msra.mxu0 %v598
    %631 = vmatprep.subr.mxu0 0.0
    %632 = vmatpush1.msra.mxu0 %v599
    %633 = vmatprep.subr.mxu0 0.0
    %634 = vmatpush1.msra.mxu0 %v600
    %635 = vmatprep.subr.mxu0 0.0
    %636 = vmatpush1.msra.mxu0 %v601
    %637 = vmatprep.subr.mxu0 0.0
    %638 = vmatpush1.msra.mxu0 %v602
    %639 = vmatprep.subr.mxu0 0.0
    %640 = vmatpush1.msra.mxu0 %v603
    %641 = vmatprep.subr.mxu0 0.0
    %642 = vmatpush1.msra.mxu0 %v604
    %643 = vmatprep.subr.mxu0 0.0
    %644 = vmatpush1.msra.mxu0 %v605
    %645 = vmatprep.subr.mxu0 0.0
    %646 = vmatpush1.msra.mxu0 0.0
    %647 = vmatprep.subr.mxu0 0.0
    %648 = vmatpush1.msra.mxu0 0.0
    %649 = vmatprep.subr.mxu0 0.0
    %650 = vmatpush1.msra.mxu0 0.0
    %651 = vmatprep.subr.mxu0 0.0
    %652 = vmatpush1.msra.mxu0 0.0
    %653 = vmatprep.subr.mxu0 0.0
    %654 = vmatpush1.msra.mxu0 0.0
    %655 = vmatprep.subr.mxu0 0.0
    %656 = vmatpush1.msra.mxu0 0.0
    %657 = vmatprep.subr.mxu0 0.0
    %658 = vmatpush1.msra.mxu0 0.0
    %659 = vmatprep.subr.mxu0 0.0
    %660 = vmatpush1.msra.mxu0 0.0
    %661 = vmatprep.subr.mxu0 0.0
    %662 = vmatpush1.msra.mxu0 0.0
    %663 = vmatprep.subr.mxu0 0.0
    %664 = vmatpush1.msra.mxu0 0.0
    %665 = vmatprep.subr.mxu0 0.0
    %666 = vmatpush1.msra.mxu0 0.0
    %667 = vmatprep.subr.mxu0 0.0
    %668 = vmatpush1.msra.mxu0 0.0
    %669 = vmatprep.subr.mxu0 0.0
    %670 = vmatpush1.msra.mxu0 0.0
    %671 = vmatprep.subr.mxu0 0.0
    %672 = vmatpush1.msra.mxu0 0.0
    %673 = vmatprep.subr.mxu0 0.0
    %674 = vmatpush1.msra.mxu0 0.0
    %675 = vmatprep.subr.mxu0 0.0
    %676 = vmatpush1.msra.mxu0 0.0
    %677 = vmatprep.mubr.f32.mxu0 0.0
    %678 = vmatmul.mubr.f32.gmra.mrb[0].mxu0 %v589
    %v679 = vpop.f32.mrb[0].mxu0
    %v680 = vadd.f32 %v611, %v679
    %v681 = vpop.f32.mrb[0].mxu0
    %682 = vdwg.mxu0
    %683 = vst [vmem:[%s9] sm:$0xff] %v680
    // Predicated region
    $region62: #{ans_navie_trans_forward.1} parent=1 // pred_check
      _
    $region63: #{ans_navie_trans_forward.1} parent=1 // pred_check_branch
      %685 = sbr.rel (0) target = $region65
    $region64: #{ans_navie_trans_forward.1} parent=1 // pred_region
      _
    $region65: #{ans_navie_trans_forward.1} parent=1 // pred_fallthru
      _
    // Predicated region
    $region66: #{ans_navie_trans_forward.1} parent=1 // pred_check
      _
    $region67: #{ans_navie_trans_forward.1} parent=1 // pred_check_branch
      %687 = sbr.rel (0) target = $region69
    $region68: #{ans_navie_trans_forward.1} parent=1 // pred_region
      _
    $region69: #{ans_navie_trans_forward.1} parent=1 // pred_fallthru
      _
    // Predicated region
    $region70: #{ans_navie_trans_forward.1} parent=1 // pred_check
      _
    $region71: #{ans_navie_trans_forward.1} parent=1 // pred_check_branch
      %689 = sbr.rel (0) target = $region73
    $region72: #{ans_navie_trans_forward.1} parent=1 // pred_region
      _
    $region73: #{ans_navie_trans_forward.1} parent=1 // pred_fallthru
      _
    // Predicated region
    $region74: #{ans_navie_trans_forward.1} parent=1 // pred_check
      _
    $region75: #{ans_navie_trans_forward.1} parent=1 // pred_check_branch
      %691 = sbr.rel (0) target = $region77
    $region76: #{ans_navie_trans_forward.1} parent=1 // pred_region
      _
    $region77: #{ans_navie_trans_forward.1} parent=1 // pred_fallthru
      _
    %692 = vsyncpa [#allocation8], 1
    %693 = vsyncpa [#allocation10], 1
  %694 = vsyncmov [#allocation4]
  %s695 = vpop.sfrf %694
  %p696 = scmp.eq.s32.totalorder %s695, 0
  %p697 = pneg %p696
  %699 = shalt.err (%p697)
  %s700 = scalar_lea.sflag [#allocation4], 1
  %701 = vsyncmov %s700
  %s702 = vpop.sfrf %701
  %p703 = scmp.eq.s32.totalorder %s702, 0
  %p704 = pneg %p703
  %706 = shalt.err (%p704)
  %s707 = scalar_lea.sflag [#allocation4], 2
  %708 = vsyncmov %s707
  %s709 = vpop.sfrf %708
  %p710 = scmp.eq.s32.totalorder %s709, 0
  %p711 = pneg %p710
  %713 = shalt.err (%p711)
  %s714 = scalar_lea.sflag [#allocation4], 3
  %715 = vsyncmov %s714
  %s716 = vpop.sfrf %715
  %p717 = scmp.eq.s32.totalorder %s716, 0
  %p718 = pneg %p717
  %720 = shalt.err (%p718)

</llo_original>
